<compile_context>
chip_gen: v5e
topology: v5e:2x2
jax: 0.10.0
libtpu: 0.0.40
codegen_flags: <defaults>
</compile_context>

<pallas_src>
import jax
import jax.numpy as jnp
from jax.experimental import pallas as pl
from jax.experimental.pallas import tpu as pltpu

IN_FEATURES = 768
HIDDEN = 64


def _round_up(n, m):
    return ((n + m - 1) // m) * m


def _mlp_kernel(x_ref, w1_ref, b1_ref, w2_ref, b2_ref, o_ref):
    # x_ref:  (TILE_B, 768)   w1_ref: (768, 64)  b1_ref: (1, 64)
    # w2_ref: (1, 64)         b2_ref: (1, 1)     o_ref:  (TILE_B, 1)
    x = x_ref[...]
    h = jnp.dot(x, w1_ref[...], preferred_element_type=jnp.float32) + b1_ref[...]
    h = jnp.maximum(h, 0.0)                                    # ReLU
    # Second layer (out_features == 1): VPU multiply + cross-lane reduce
    # instead of a lane-sparse N=1 MXU matmul.
    o = jnp.sum(h * w2_ref[...], axis=-1, keepdims=True) + b2_ref[...]
    o_ref[...] = o.astype(o_ref.dtype)


def net_forward(x_nchw, w1, b1, w2, b2, *, tile_b=512):
    """x_nchw: (B, C, H, W) with C*H*W == 768. Returns (B, 1) float32.

    w1: (768, 64), b1: (64,), w2: (64, 1), b2: (1,)  -- weights stored as
    (in, out), equivalent to PyTorch's x @ W.T with W of shape (out, in).
    """
    B = x_nchw.shape[0]
    x_flat = x_nchw.reshape(B, -1).astype(jnp.float32)         # torch.flatten(x, 1)
    assert x_flat.shape[1] == IN_FEATURES, "flattened feature dim must be 768"

    # Pick the batch tile: large enough to amortize per-step overhead, but not
    # larger than the (sublane-aligned) batch itself for tiny inputs.
    tb = min(int(tile_b), _round_up(B, 8))
    tb = _round_up(tb, 8)
    Bp = _round_up(B, tb)
    if Bp != B:
        x_flat = jnp.pad(x_flat, ((0, Bp - B), (0, 0)))
    grid = (Bp // tb,)

    # 2-D parameter layouts for clean broadcasting inside the kernel.
    w1_f = w1.astype(jnp.float32)                              # (768, 64)
    b1_2d = b1.reshape(1, HIDDEN).astype(jnp.float32)          # (1, 64)
    w2_row = w2.reshape(1, HIDDEN).astype(jnp.float32)         # (1, 64)
    b2_2d = b2.reshape(1, 1).astype(jnp.float32)               # (1, 1)

    resident = lambda shape: pl.BlockSpec(shape, lambda i: (0,) * len(shape))

    out = pl.pallas_call(
        _mlp_kernel,
        out_shape=jax.ShapeDtypeStruct((Bp, 1), jnp.float32),
        grid=grid,
        in_specs=[
            pl.BlockSpec((tb, IN_FEATURES), lambda i: (i, 0)),  # x tile
            resident((IN_FEATURES, HIDDEN)),                    # W1 (VMEM-resident)
            resident((1, HIDDEN)),                              # b1
            resident((1, HIDDEN)),                              # W2 as a row
            resident((1, 1)),                                   # b2
        ],
        out_specs=pl.BlockSpec((tb, 1), lambda i: (i, 0)),
        compiler_params=pltpu.CompilerParams(
            dimension_semantics=("parallel",),
            vmem_limit_bytes=32 * 1024 * 1024,
        ),
    )(x_flat, w1_f, b1_2d, w2_row, b2_2d)

    return out[:B]


def _reference(x_nchw, w1, b1, w2, b2):
    x = x_nchw.reshape(x_nchw.shape[0], -1)
    h = jnp.maximum(x @ w1 + b1, 0.0)
    return h @ w2 + b2


if __name__ == "__main__":
    key = jax.random.PRNGKey(0)
    k_x, k_w1, k_b1, k_w2, k_b2 = jax.random.split(key, 5)

    # Deterministic parameter init (uniform, PyTorch-like scale 1/sqrt(fan_in)).
    bound1 = 1.0 / (IN_FEATURES ** 0.5)
    bound2 = 1.0 / (HIDDEN ** 0.5)
    w1 = jax.random.uniform(k_w1, (IN_FEATURES, HIDDEN), jnp.float32, -bound1, bound1)
    b1 = jax.random.uniform(k_b1, (HIDDEN,), jnp.float32, -bound1, bound1)
    w2 = jax.random.uniform(k_w2, (HIDDEN, 1), jnp.float32, -bound2, bound2)
    b2 = jax.random.uniform(k_b2, (1,), jnp.float32, -bound2, bound2)

    # Small input consistent with the module: (B=2, C=3, H=16, W=16) -> 768 feats.
    B = 2
    x = jax.random.normal(k_x, (B, 3, 16, 16), dtype=jnp.float32)

    out = net_forward(x, w1, b1, w2, b2)
    jax.block_until_ready(out)
    ref = _reference(x, w1, b1, w2, b2)
    assert out.shape == (B, 1), out.shape
    assert jnp.allclose(out, ref, atol=1e-4, rtol=1e-4), "mismatch vs JAX reference (B=2)"

    # Also exercise the batch-tiled path with a non-multiple batch (padding tail).
    B2 = 100
    x2 = jax.random.normal(jax.random.PRNGKey(1), (B2, 3, 16, 16), dtype=jnp.float32)
    out2 = net_forward(x2, w1, b1, w2, b2, tile_b=64)
    jax.block_until_ready(out2)
    ref2 = _reference(x2, w1, b1, w2, b2)
    assert out2.shape == (B2, 1), out2.shape
    assert jnp.allclose(out2, ref2, atol=1e-4, rtol=1e-4), "mismatch vs JAX reference (B=100)"

    print("KERNEL_OK")
</pallas_src>

<mosaic_0001>
module attributes {stable_mosaic.version = 11 : i64} {
  func.func @_mlp_kernel(%arg0: i32, %arg1: memref<8x768xf32, #tpu.memory_space<vmem>>, %arg2: memref<768x64xf32, #tpu.memory_space<vmem>>, %arg3: memref<1x64xf32, #tpu.memory_space<vmem>>, %arg4: memref<1x64xf32, #tpu.memory_space<vmem>>, %arg5: memref<1x1xf32, #tpu.memory_space<vmem>>, %arg6: memref<8x1xf32, #tpu.memory_space<vmem>>) attributes {dimension_semantics = [#tpu.dimension_semantics<parallel>], iteration_bounds = array<i64: 1>, scalar_prefetch = 0 : i64, scratch_operands = 0 : i64, tpu.core_type = #tpu.core_type<tc>, window_params = [{transform_indices = @transform_0, window_bounds = array<i64: 8, 768>}, {pipeline_mode = #tpu.pipeline_mode<synchronous>, transform_indices = @transform_1, window_bounds = array<i64: 768, 64>}, {pipeline_mode = #tpu.pipeline_mode<synchronous>, transform_indices = @transform_2, window_bounds = array<i64: 1, 64>}, {pipeline_mode = #tpu.pipeline_mode<synchronous>, transform_indices = @transform_3, window_bounds = array<i64: 1, 64>}, {pipeline_mode = #tpu.pipeline_mode<synchronous>, transform_indices = @transform_4, window_bounds = array<i64: 1, 1>}, {transform_indices = @transform_5, window_bounds = array<i64: 8, 1>}]} {
    %c0 = arith.constant 0 : index
    %c0_0 = arith.constant 0 : index
    %0 = vector.load %arg1[%c0, %c0_0] : memref<8x768xf32, #tpu.memory_space<vmem>>, vector<8x768xf32>
    %c0_1 = arith.constant 0 : index
    %c0_2 = arith.constant 0 : index
    %1 = vector.load %arg2[%c0_1, %c0_2] : memref<768x64xf32, #tpu.memory_space<vmem>>, vector<768x64xf32>
    %cst = arith.constant dense<0.000000e+00> : vector<8x64xf32>
    %2 = tpu.matmul %0, %1, %cst {dimension_numbers = #tpu.dot_dimension_numbers<[1], [0], [0], [1], [0, 0, 1, 1], [], []>} : vector<8x768xf32>, vector<768x64xf32>, vector<8x64xf32> -> vector<8x64xf32>
    %c0_3 = arith.constant 0 : index
    %c0_4 = arith.constant 0 : index
    %3 = vector.load %arg3[%c0_3, %c0_4] : memref<1x64xf32, #tpu.memory_space<vmem>>, vector<1x64xf32>
    %4 = vector.broadcast %3 : vector<1x64xf32> to vector<8x64xf32>
    %5 = arith.addf %2, %4 : vector<8x64xf32>
    %cst_5 = arith.constant 0.000000e+00 : f32
    %6 = vector.broadcast %cst_5 : f32 to vector<8x64xf32>
    %7 = arith.maximumf %5, %6 : vector<8x64xf32>
    %c0_6 = arith.constant 0 : index
    %c0_7 = arith.constant 0 : index
    %8 = vector.load %arg4[%c0_6, %c0_7] : memref<1x64xf32, #tpu.memory_space<vmem>>, vector<1x64xf32>
    %9 = vector.broadcast %8 : vector<1x64xf32> to vector<8x64xf32>
    %10 = arith.mulf %7, %9 : vector<8x64xf32>
    %cst_8 = arith.constant dense<0.000000e+00> : vector<8xf32>
    %11 = vector.multi_reduction <add>, %10, %cst_8 [1] : vector<8x64xf32> to vector<8xf32>
    %12 = vector.shape_cast %11 : vector<8xf32> to vector<8x1xf32>
    %c0_9 = arith.constant 0 : index
    %c0_10 = arith.constant 0 : index
    %13 = vector.load %arg5[%c0_9, %c0_10] : memref<1x1xf32, #tpu.memory_space<vmem>>, vector<1x1xf32>
    %14 = vector.broadcast %13 : vector<1x1xf32> to vector<8x1xf32>
    %15 = arith.addf %12, %14 : vector<8x1xf32>
    %c0_11 = arith.constant 0 : index
    %c0_12 = arith.constant 0 : index
    %16 = vector.load %arg6[%c0_11, %c0_12] : memref<8x1xf32, #tpu.memory_space<vmem>>, vector<8x1xf32>
    tpu.vector_store %arg6[%c0_11, %c0_12], %15 {strides = array<i32>} : memref<8x1xf32, #tpu.memory_space<vmem>>, vector<8x1xf32>,
    return
  }
  func.func @transform_0(%arg0: i32) -> (i32, i32) {
    %c0_i32 = arith.constant 0 : i32
    %c0_i32_0 = arith.constant 0 : i32
    return %arg0, %c0_i32 : i32, i32
  }
  func.func @transform_1(%arg0: i32) -> (i32, i32) {
    %c0_i32 = arith.constant 0 : i32
    %c0_i32_0 = arith.constant 0 : i32
    %c0_i32_1 = arith.constant 0 : i32
    return %c0_i32, %c0_i32_0 : i32, i32
  }
  func.func @transform_2(%arg0: i32) -> (i32, i32) {
    %c0_i32 = arith.constant 0 : i32
    %c0_i32_0 = arith.constant 0 : i32
    %c0_i32_1 = arith.constant 0 : i32
    return %c0_i32, %c0_i32_0 : i32, i32
  }
  func.func @transform_3(%arg0: i32) -> (i32, i32) {
    %c0_i32 = arith.constant 0 : i32
    %c0_i32_0 = arith.constant 0 : i32
    %c0_i32_1 = arith.constant 0 : i32
    return %c0_i32, %c0_i32_0 : i32, i32
  }
  func.func @transform_4(%arg0: i32) -> (i32, i32) {
    %c0_i32 = arith.constant 0 : i32
    %c0_i32_0 = arith.constant 0 : i32
    %c0_i32_1 = arith.constant 0 : i32
    return %c0_i32, %c0_i32_0 : i32, i32
  }
  func.func @transform_5(%arg0: i32) -> (i32, i32) {
    %c0_i32 = arith.constant 0 : i32
    %c0_i32_0 = arith.constant 0 : i32
    return %arg0, %c0_i32 : i32, i32
  }
}

</mosaic_0001>

<llo_original>
// kernel: tpu_custom_call.1
$region0: #{tpu_custom_call.1}
  #allocation0 [shape = 'u32[]', space=smem, size = 0x4, offset = 0x4, fixed_abs, tag = 'smem constant byte address 0x4 - core index']
  #allocation1 [shape = 'u32[72,128]{1,0:T(1,128)}', space=vmem, size = 0x9000, scoped, tag = 'internal scratch']
  #allocation2 [shape = 'f32[1,1]{1,0:T(1,128)S(1)}', space=vmem, size = 0x200, scoped, tag = 'scoped memory for tpu_custom_call.1']
  %s0 = inlined_call_operand.vmem [shape: f32[8,768], index: 0, kind: input, shape index: {}]
  %s1 = inlined_call_operand.vmem [shape: f32[768,64], index: 1, kind: input, shape index: {}]
  %s2 = inlined_call_operand.vmem [shape: f32[1,64], index: 2, kind: input, shape index: {}]
  %s3 = inlined_call_operand.vmem [shape: f32[1,64], index: 3, kind: input, shape index: {}]
  %s4 = inlined_call_operand.<no memory space> [shape: f32[1,1], index: 4, kind: input, shape index: {}]
  %s5 = inlined_call_operand.vmem [shape: f32[8,1], index: 5, kind: output, shape index: {}]
  %s6 = sld [smem:[#allocation0]]
  $region30: #{tpu_custom_call.1} parent=0
    _
  %s8 = ssub.s32 1, %s6
  %s9 = scalar_select 0, %s8, %s6
  %v10 = vstv %s4
  %11 = vst [vmem:[#allocation2] sm:$0x1] %v10
  // Predicated region
  $region2: #{tpu_custom_call.1} parent=0 // pred_check
    _
  $region3: #{tpu_custom_call.1} parent=0 // pred_check_branch
    %13 = sbr.rel (0) target = $region5
  $region4: #{tpu_custom_call.1} parent=0 // pred_region
    _
  $region5: #{tpu_custom_call.1} parent=0 // pred_fallthru
    _
  // Predicated region
  $region6: #{tpu_custom_call.1} parent=0 // pred_check
    _
  $region7: #{tpu_custom_call.1} parent=0 // pred_check_branch
    %15 = sbr.rel (0) target = $region9
  $region8: #{tpu_custom_call.1} parent=0 // pred_region
    _
  $region9: #{tpu_custom_call.1} parent=0 // pred_fallthru
    _
  // Predicated region
  $region10: #{tpu_custom_call.1} parent=0 // pred_check
    _
  $region11: #{tpu_custom_call.1} parent=0 // pred_check_branch
    %17 = sbr.rel (0) target = $region13
  $region12: #{tpu_custom_call.1} parent=0 // pred_region
    _
  $region13: #{tpu_custom_call.1} parent=0 // pred_fallthru
    _
  // Predicated region
  $region14: #{tpu_custom_call.1} parent=0 // pred_check
    _
  $region15: #{tpu_custom_call.1} parent=0 // pred_check_branch
    %19 = sbr.rel (0) target = $region17
  $region16: #{tpu_custom_call.1} parent=0 // pred_region
    _
  $region17: #{tpu_custom_call.1} parent=0 // pred_fallthru
    _
  // Predicated region
  $region18: #{tpu_custom_call.1} parent=0 // pred_check
    _
  $region19: #{tpu_custom_call.1} parent=0 // pred_check_branch
    %21 = sbr.rel (0) target = $region21
  $region20: #{tpu_custom_call.1} parent=0 // pred_region
    _
  $region21: #{tpu_custom_call.1} parent=0 // pred_fallthru
    _
  %v22 = vld [vmem:[%s0] sm:$0xff]
  %v23 = vld [vmem:[%s0 + $0x8] sm:$0xff]
  %v24 = vld [vmem:[%s0 + $0x10] sm:$0xff]
  %v25 = vld [vmem:[%s0 + $0x18] sm:$0xff]
  %v26 = vld [vmem:[%s0 + $0x20] sm:$0xff]
  %v27 = vld [vmem:[%s0 + $0x28] sm:$0xff]
  %v28 = vld [vmem:[%s1] sm:$0xff]
  %v29 = vld [vmem:[%s1 + $0x8] sm:$0xff]
  %v30 = vld [vmem:[%s1 + $0x10] sm:$0xff]
  %v31 = vld [vmem:[%s1 + $0x18] sm:$0xff]
  %v32 = vld [vmem:[%s1 + $0x20] sm:$0xff]
  %v33 = vld [vmem:[%s1 + $0x28] sm:$0xff]
  %v34 = vld [vmem:[%s1 + $0x30] sm:$0xff]
  %v35 = vld [vmem:[%s1 + $0x38] sm:$0xff]
  %v36 = vld [vmem:[%s1 + $0x40] sm:$0xff]
  %v37 = vld [vmem:[%s1 + $0x48] sm:$0xff]
  %v38 = vld [vmem:[%s1 + $0x50] sm:$0xff]
  %v39 = vld [vmem:[%s1 + $0x58] sm:$0xff]
  %v40 = vld [vmem:[%s1 + $0x60] sm:$0xff]
  %v41 = vld [vmem:[%s1 + $0x68] sm:$0xff]
  %v42 = vld [vmem:[%s1 + $0x70] sm:$0xff]
  %v43 = vld [vmem:[%s1 + $0x78] sm:$0xff]
  %v44 = vld [vmem:[%s1 + $0x80] sm:$0xff]
  %v45 = vld [vmem:[%s1 + $0x88] sm:$0xff]
  %v46 = vld [vmem:[%s1 + $0x90] sm:$0xff]
  %v47 = vld [vmem:[%s1 + $0x98] sm:$0xff]
  %v48 = vld [vmem:[%s1 + $0xa0] sm:$0xff]
  %v49 = vld [vmem:[%s1 + $0xa8] sm:$0xff]
  %v50 = vld [vmem:[%s1 + $0xb0] sm:$0xff]
  %v51 = vld [vmem:[%s1 + $0xb8] sm:$0xff]
  %v52 = vld [vmem:[%s1 + $0xc0] sm:$0xff]
  %v53 = vld [vmem:[%s1 + $0xc8] sm:$0xff]
  %v54 = vld [vmem:[%s1 + $0xd0] sm:$0xff]
  %v55 = vld [vmem:[%s1 + $0xd8] sm:$0xff]
  %v56 = vld [vmem:[%s1 + $0xe0] sm:$0xff]
  %v57 = vld [vmem:[%s1 + $0xe8] sm:$0xff]
  %v58 = vld [vmem:[%s1 + $0xf0] sm:$0xff]
  %v59 = vld [vmem:[%s1 + $0xf8] sm:$0xff]
  %v60 = vld [vmem:[%s1 + $0x100] sm:$0xff]
  %v61 = vld [vmem:[%s1 + $0x108] sm:$0xff]
  %v62 = vld [vmem:[%s1 + $0x110] sm:$0xff]
  %v63 = vld [vmem:[%s1 + $0x118] sm:$0xff]
  %v64 = vld [vmem:[%s1 + $0x120] sm:$0xff]
  %v65 = vld [vmem:[%s1 + $0x128] sm:$0xff]
  %v66 = vld [vmem:[%s1 + $0x130] sm:$0xff]
  %v67 = vld [vmem:[%s1 + $0x138] sm:$0xff]
  %v68 = vld [vmem:[%s1 + $0x140] sm:$0xff]
  %v69 = vld [vmem:[%s1 + $0x148] sm:$0xff]
  %v70 = vld [vmem:[%s1 + $0x150] sm:$0xff]
  %v71 = vld [vmem:[%s1 + $0x158] sm:$0xff]
  %v72 = vld [vmem:[%s1 + $0x160] sm:$0xff]
  %v73 = vld [vmem:[%s1 + $0x168] sm:$0xff]
  %v74 = vld [vmem:[%s1 + $0x170] sm:$0xff]
  %v75 = vld [vmem:[%s1 + $0x178] sm:$0xff]
  %v76 = vld [vmem:[%s1 + $0x180] sm:$0xff]
  %v77 = vld [vmem:[%s1 + $0x188] sm:$0xff]
  %v78 = vld [vmem:[%s1 + $0x190] sm:$0xff]
  %v79 = vld [vmem:[%s1 + $0x198] sm:$0xff]
  %v80 = vld [vmem:[%s1 + $0x1a0] sm:$0xff]
  %v81 = vld [vmem:[%s1 + $0x1a8] sm:$0xff]
  %v82 = vld [vmem:[%s1 + $0x1b0] sm:$0xff]
  %v83 = vld [vmem:[%s1 + $0x1b8] sm:$0xff]
  %v84 = vld [vmem:[%s1 + $0x1c0] sm:$0xff]
  %v85 = vld [vmem:[%s1 + $0x1c8] sm:$0xff]
  %v86 = vld [vmem:[%s1 + $0x1d0] sm:$0xff]
  %v87 = vld [vmem:[%s1 + $0x1d8] sm:$0xff]
  %v88 = vld [vmem:[%s1 + $0x1e0] sm:$0xff]
  %v89 = vld [vmem:[%s1 + $0x1e8] sm:$0xff]
  %v90 = vld [vmem:[%s1 + $0x1f0] sm:$0xff]
  %v91 = vld [vmem:[%s1 + $0x1f8] sm:$0xff]
  %v92 = vld [vmem:[%s1 + $0x200] sm:$0xff]
  %v93 = vld [vmem:[%s1 + $0x208] sm:$0xff]
  %v94 = vld [vmem:[%s1 + $0x210] sm:$0xff]
  %v95 = vld [vmem:[%s1 + $0x218] sm:$0xff]
  %v96 = vld [vmem:[%s1 + $0x220] sm:$0xff]
  %v97 = vld [vmem:[%s1 + $0x228] sm:$0xff]
  %v98 = vld [vmem:[%s1 + $0x230] sm:$0xff]
  %v99 = vld [vmem:[%s1 + $0x238] sm:$0xff]
  %v100 = vld [vmem:[%s1 + $0x240] sm:$0xff]
  %v101 = vld [vmem:[%s1 + $0x248] sm:$0xff]
  %v102 = vld [vmem:[%s1 + $0x250] sm:$0xff]
  %v103 = vld [vmem:[%s1 + $0x258] sm:$0xff]
  %v104 = vld [vmem:[%s1 + $0x260] sm:$0xff]
  %v105 = vld [vmem:[%s1 + $0x268] sm:$0xff]
  %v106 = vld [vmem:[%s1 + $0x270] sm:$0xff]
  %v107 = vld [vmem:[%s1 + $0x278] sm:$0xff]
  %v108 = vld [vmem:[%s1 + $0x280] sm:$0xff]
  %v109 = vld [vmem:[%s1 + $0x288] sm:$0xff]
  %v110 = vld [vmem:[%s1 + $0x290] sm:$0xff]
  %v111 = vld [vmem:[%s1 + $0x298] sm:$0xff]
  %v112 = vld [vmem:[%s1 + $0x2a0] sm:$0xff]
  %v113 = vld [vmem:[%s1 + $0x2a8] sm:$0xff]
  %v114 = vld [vmem:[%s1 + $0x2b0] sm:$0xff]
  %v115 = vld [vmem:[%s1 + $0x2b8] sm:$0xff]
  %v116 = vld [vmem:[%s1 + $0x2c0] sm:$0xff]
  %v117 = vld [vmem:[%s1 + $0x2c8] sm:$0xff]
  %v118 = vld [vmem:[%s1 + $0x2d0] sm:$0xff]
  %v119 = vld [vmem:[%s1 + $0x2d8] sm:$0xff]
  %v120 = vld [vmem:[%s1 + $0x2e0] sm:$0xff]
  %v121 = vld [vmem:[%s1 + $0x2e8] sm:$0xff]
  %v122 = vld [vmem:[%s1 + $0x2f0] sm:$0xff]
  %v123 = vld [vmem:[%s1 + $0x2f8] sm:$0xff]
  %v124 = vld [vmem:[%s2] sm:$0x1]
  %v126 = vperm.slane %v124, 0
  %128 = vmatpush.msra.mxu0 %v43
  %129 = vmatpush.msra.mxu0 %v42
  %130 = vmatpush.msra.mxu0 %v41
  %131 = vmatpush.msra.mxu0 %v40
  %132 = vmatpush.msra.mxu0 %v39
  %133 = vmatpush.msra.mxu0 %v38
  %134 = vmatpush.msra.mxu0 %v37
  %135 = vmatpush.msra.mxu0 %v36
  %136 = vmatpush.msra.mxu0 %v35
  %137 = vmatpush.msra.mxu0 %v34
  %138 = vmatpush.msra.mxu0 %v33
  %139 = vmatpush.msra.mxu0 %v32
  %140 = vmatpush.msra.mxu0 %v31
  %141 = vmatpush.msra.mxu0 %v30
  %142 = vmatpush.msra.mxu0 %v29
  %143 = vmatpush.msra.mxu0 %v28
  %144 = vmatmul.f32.gmra.mxu0 %v22
  %v145 = vpop.f32.mrf.mxu0
  %v146 = vadd.f32 %v126, %v145
  %147 = vdwg.mxu0
  %148 = vmatpush.msra.mxu0 %v59
  %149 = vmatpush.msra.mxu0 %v58
  %150 = vmatpush.msra.mxu0 %v57
  %151 = vmatpush.msra.mxu0 %v56
  %152 = vmatpush.msra.mxu0 %v55
  %153 = vmatpush.msra.mxu0 %v54
  %154 = vmatpush.msra.mxu0 %v53
  %155 = vmatpush.msra.mxu0 %v52
  %156 = vmatpush.msra.mxu0 %v51
  %157 = vmatpush.msra.mxu0 %v50
  %158 = vmatpush.msra.mxu0 %v49
  %159 = vmatpush.msra.mxu0 %v48
  %160 = vmatpush.msra.mxu0 %v47
  %161 = vmatpush.msra.mxu0 %v46
  %162 = vmatpush.msra.mxu0 %v45
  %163 = vmatpush.msra.mxu0 %v44
  %164 = vmatmul.f32.gmra.mxu0 %v23
  %v165 = vpop.f32.mrf.mxu0
  %v166 = vadd.f32 %v146, %v165
  %167 = vdwg.mxu0
  %168 = vmatpush.msra.mxu0 %v75
  %169 = vmatpush.msra.mxu0 %v74
  %170 = vmatpush.msra.mxu0 %v73
  %171 = vmatpush.msra.mxu0 %v72
  %172 = vmatpush.msra.mxu0 %v71
  %173 = vmatpush.msra.mxu0 %v70
  %174 = vmatpush.msra.mxu0 %v69
  %175 = vmatpush.msra.mxu0 %v68
  %176 = vmatpush.msra.mxu0 %v67
  %177 = vmatpush.msra.mxu0 %v66
  %178 = vmatpush.msra.mxu0 %v65
  %179 = vmatpush.msra.mxu0 %v64
  %180 = vmatpush.msra.mxu0 %v63
  %181 = vmatpush.msra.mxu0 %v62
  %182 = vmatpush.msra.mxu0 %v61
  %183 = vmatpush.msra.mxu0 %v60
  %184 = vmatmul.f32.gmra.mxu0 %v24
  %v185 = vpop.f32.mrf.mxu0
  %v186 = vadd.f32 %v166, %v185
  %187 = vdwg.mxu0
  %188 = vmatpush.msra.mxu0 %v91
  %189 = vmatpush.msra.mxu0 %v90
  %190 = vmatpush.msra.mxu0 %v89
  %191 = vmatpush.msra.mxu0 %v88
  %192 = vmatpush.msra.mxu0 %v87
  %193 = vmatpush.msra.mxu0 %v86
  %194 = vmatpush.msra.mxu0 %v85
  %195 = vmatpush.msra.mxu0 %v84
  %196 = vmatpush.msra.mxu0 %v83
  %197 = vmatpush.msra.mxu0 %v82
  %198 = vmatpush.msra.mxu0 %v81
  %199 = vmatpush.msra.mxu0 %v80
  %200 = vmatpush.msra.mxu0 %v79
  %201 = vmatpush.msra.mxu0 %v78
  %202 = vmatpush.msra.mxu0 %v77
  %203 = vmatpush.msra.mxu0 %v76
  %204 = vmatmul.f32.gmra.mxu0 %v25
  %v205 = vpop.f32.mrf.mxu0
  %v206 = vadd.f32 %v186, %v205
  %207 = vdwg.mxu0
  %208 = vmatpush.msra.mxu0 %v107
  %209 = vmatpush.msra.mxu0 %v106
  %210 = vmatpush.msra.mxu0 %v105
  %211 = vmatpush.msra.mxu0 %v104
  %212 = vmatpush.msra.mxu0 %v103
  %213 = vmatpush.msra.mxu0 %v102
  %214 = vmatpush.msra.mxu0 %v101
  %215 = vmatpush.msra.mxu0 %v100
  %216 = vmatpush.msra.mxu0 %v99
  %217 = vmatpush.msra.mxu0 %v98
  %218 = vmatpush.msra.mxu0 %v97
  %219 = vmatpush.msra.mxu0 %v96
  %220 = vmatpush.msra.mxu0 %v95
  %221 = vmatpush.msra.mxu0 %v94
  %222 = vmatpush.msra.mxu0 %v93
  %223 = vmatpush.msra.mxu0 %v92
  %224 = vmatmul.f32.gmra.mxu0 %v26
  %v225 = vpop.f32.mrf.mxu0
  %v226 = vadd.f32 %v206, %v225
  %227 = vdwg.mxu0
  %228 = vmatpush.msra.mxu0 %v123
  %229 = vmatpush.msra.mxu0 %v122
  %230 = vmatpush.msra.mxu0 %v121
  %231 = vmatpush.msra.mxu0 %v120
  %232 = vmatpush.msra.mxu0 %v119
  %233 = vmatpush.msra.mxu0 %v118
  %234 = vmatpush.msra.mxu0 %v117
  %235 = vmatpush.msra.mxu0 %v116
  %236 = vmatpush.msra.mxu0 %v115
  %237 = vmatpush.msra.mxu0 %v114
  %238 = vmatpush.msra.mxu0 %v113
  %239 = vmatpush.msra.mxu0 %v112
  %240 = vmatpush.msra.mxu0 %v111
  %241 = vmatpush.msra.mxu0 %v110
  %242 = vmatpush.msra.mxu0 %v109
  %243 = vmatpush.msra.mxu0 %v108
  %244 = vmatmul.f32.gmra.mxu0 %v27
  %v245 = vpop.f32.mrf.mxu0
  %v246 = vadd.f32 %v226, %v245
  %247 = vdwg.mxu0
  %v248 = vmax.f32 %v246, 0.0
  %v249 = vld [vmem:[%s3] sm:$0x1]
  %v251 = vperm.slane %v249, 0
  %v253 = vmul.f32 %v248, %v251
  %vm254 = vcmask 523264
  %v255 = vsel %vm254, %v253, 0.0
  %256 = vadd.xlane.f32.xlu0 %v255
  %v257 = vpop.xlane.xlu0 %256
  %v258 = vld [vmem:[#allocation2] sm:$0x1]
  %v260 = vperm.slane %v258, 0
  %v262 = vadd.f32 %v257, %v260
  %vm263 = vcmask 7168
  %264 = vst.msk [vmem:[%s5] sm:$0xff] %vm263, %v262
  // Predicated region
  $region22: #{tpu_custom_call.1} parent=0 // pred_check
    _
  $region23: #{tpu_custom_call.1} parent=0 // pred_check_branch
    %266 = sbr.rel (0) target = $region25
  $region24: #{tpu_custom_call.1} parent=0 // pred_region
    _
  $region25: #{tpu_custom_call.1} parent=0 // pred_fallthru
    _
  // Predicated region
  $region26: #{tpu_custom_call.1} parent=0 // pred_check
    _
  $region27: #{tpu_custom_call.1} parent=0 // pred_check_branch
    %268 = sbr.rel (0) target = $region29
  $region28: #{tpu_custom_call.1} parent=0 // pred_region
    _
  $region29: #{tpu_custom_call.1} parent=0 // pred_fallthru
    _

</llo_original>
